<compile_context>
chip_gen: v7x
topology: tpu7x:2x2x1
jax: 0.10.0
libtpu: 0.0.40
codegen_flags: <defaults>
</compile_context>

<pallas_src>
import functools

import jax
import jax.numpy as jnp
from jax.experimental import pallas as pl
from jax.experimental.pallas import tpu as pltpu


def _critic_kernel(s_ref, a_ref, w1s_ref, w1a_ref, b1_ref,
                   w2_ref, b2_ref, w3_ref, b3_ref, o_ref):
    # s_ref: (TB, state_dim) bf16, a_ref: (TB, action_dim) bf16.
    s = s_ref[...]
    a = a_ref[...]

    # Layer 1: split matmul replaces the [s, a] concat; f32 accumulation on
    # the MXU, bias add + ReLU in f32 on the VPU.
    h1 = (jnp.dot(s, w1s_ref[...], preferred_element_type=jnp.float32)
          + jnp.dot(a, w1a_ref[...], preferred_element_type=jnp.float32)
          + b1_ref[...])
    h1 = jnp.maximum(h1, 0.0)

    # Layer 2 (bf16 operands, f32 accumulation / elementwise).
    h2 = jnp.dot(h1.astype(w2_ref.dtype), w2_ref[...],
                 preferred_element_type=jnp.float32) + b2_ref[...]
    h2 = jnp.maximum(h2, 0.0)

    # Layer 3 (H -> 1): VPU multiply + lane reduce instead of a 1-wide MXU
    # matmul; kept fully in f32.
    q = jnp.sum(h2 * w3_ref[...], axis=-1, keepdims=True) + b3_ref[...]
    o_ref[...] = q.astype(o_ref.dtype)


@functools.partial(jax.jit, static_argnames=("block_b",))
def critic_forward(s, a, params, *, block_b=512):
    """Pallas implementation of Critic.forward(s, a).

    params = (w1, b1, w2, b2, w3, b3) with weights stored transposed relative
    to torch.nn.Linear: w1 (state_dim+action_dim, H), w2 (H, H), w3 (H, 1).
    """
    w1, b1, w2, b2, w3, b3 = params
    B, state_dim = s.shape
    action_dim = a.shape[1]
    H = w1.shape[1]

    compute_dtype = jnp.bfloat16

    # Split the first-layer weight to match the implicit [s, a] concat.
    w1_s = w1[:state_dim]
    w1_a = w1[state_dim:]

    # Batch tile: multiple of 16 sublanes (bf16 packing); 512 is a multiple of
    # both 256 (v6e/v7x MXU rows) and 128 (v5e MXU rows). Pad the batch so the
    # grid divides evenly; padded rows are sliced off at the end.
    def round_up(x, m):
        return ((x + m - 1) // m) * m

    tb = min(block_b, round_up(B, 16))
    bp = round_up(B, tb)
    if bp != B:
        pad = bp - B
        s = jnp.pad(s, ((0, pad), (0, 0)))
        a = jnp.pad(a, ((0, pad), (0, 0)))

    # bf16 operands for the MXU; biases and the tiny final layer stay f32.
    s_c = s.astype(compute_dtype)
    a_c = a.astype(compute_dtype)
    w1_s_c = w1_s.astype(compute_dtype)
    w1_a_c = w1_a.astype(compute_dtype)
    w2_c = w2.astype(compute_dtype)
    b1_2d = b1.reshape(1, H).astype(jnp.float32)
    b2_2d = b2.reshape(1, H).astype(jnp.float32)
    w3_row = w3.reshape(1, H).astype(jnp.float32)
    b3_2d = b3.reshape(1, 1).astype(jnp.float32)

    grid = (pl.cdiv(bp, tb),)

    # Batch-tiled blocks step with the grid; weight/bias blocks return a
    # constant block index so they are DMA'd once and stay resident in VMEM.
    batch_spec = lambda cols: pl.BlockSpec((tb, cols), lambda i: (i, 0))
    resident = lambda shape: pl.BlockSpec(shape, lambda i: (0, 0))

    out = pl.pallas_call(
        _critic_kernel,
        out_shape=jax.ShapeDtypeStruct((bp, 1), jnp.float32),
        grid=grid,
        in_specs=[
            batch_spec(state_dim),       # s
            batch_spec(action_dim),      # a
            resident((state_dim, H)),    # w1_s
            resident((action_dim, H)),   # w1_a
            resident((1, H)),            # b1
            resident((H, H)),            # w2
            resident((1, H)),            # b2
            resident((1, H)),            # w3 (as a row)
            resident((1, 1)),            # b3
        ],
        out_specs=batch_spec(1),
        compiler_params=pltpu.CompilerParams(
            dimension_semantics=("parallel",),       # megacore on v7x
            vmem_limit_bytes=32 * 1024 * 1024,       # safe within v7x's 64 MiB VMEM
        ),
    )(s_c, a_c, w1_s_c, w1_a_c, b1_2d, w2_c, b2_2d, w3_row, b3_2d)

    return out[:B]


def init_critic_params(key, state_dim, action_dim, hidden_width):
    """Deterministic init mimicking nn.Linear's default U(-1/sqrt(fan_in), ...)."""
    in_dim = state_dim + action_dim
    keys = jax.random.split(key, 6)

    def lin(kw, kb, fan_in, fan_out):
        bound = 1.0 / jnp.sqrt(fan_in)
        w = jax.random.uniform(kw, (fan_in, fan_out), jnp.float32, -bound, bound)
        b = jax.random.uniform(kb, (fan_out,), jnp.float32, -bound, bound)
        return w, b

    w1, b1 = lin(keys[0], keys[1], in_dim, hidden_width)
    w2, b2 = lin(keys[2], keys[3], hidden_width, hidden_width)
    w3, b3 = lin(keys[4], keys[5], hidden_width, 1)
    return (w1, b1, w2, b2, w3, b3)


def critic_ref(s, a, params, compute_dtype=jnp.bfloat16):
    """Pure-JAX reference with the same bf16-operand / f32-accumulate recipe."""
    w1, b1, w2, b2, w3, b3 = params
    x = jnp.concatenate([s, a], axis=1).astype(compute_dtype)
    h = jax.nn.relu(
        jnp.dot(x, w1.astype(compute_dtype), preferred_element_type=jnp.float32) + b1)
    h = jax.nn.relu(
        jnp.dot(h.astype(compute_dtype), w2.astype(compute_dtype),
                preferred_element_type=jnp.float32) + b2)
    return jnp.dot(h, w3.astype(jnp.float32)) + b3


def critic_ref_f32(s, a, params):
    """Full-f32 reference (original module math) for a loose sanity check."""
    w1, b1, w2, b2, w3, b3 = params
    x = jnp.concatenate([s, a], axis=1)
    h = jax.nn.relu(x @ w1 + b1)
    h = jax.nn.relu(h @ w2 + b2)
    return h @ w3 + b3


if __name__ == "__main__":
    state_dim, action_dim, hidden_width = 12, 4, 32
    batch = 8

    key = jax.random.PRNGKey(0)
    k_s, k_a, k_p = jax.random.split(key, 3)
    s = jax.random.normal(k_s, (batch, state_dim), jnp.float32)
    a = jax.random.normal(k_a, (batch, action_dim), jnp.float32)
    params = init_critic_params(k_p, state_dim, action_dim, hidden_width)

    q = critic_forward(s, a, params)
    q = jax.block_until_ready(q)

    assert q.shape == (batch, 1)

    # Bit-recipe-matched reference (bf16 operands, f32 accumulation).
    q_ref = critic_ref(s, a, params)
    assert jnp.allclose(q, q_ref, atol=1e-3, rtol=1e-3), "mismatch vs bf16 reference"

    # Loose sanity check against the exact f32 module math.
    q_f32 = critic_ref_f32(s, a, params)
    assert jnp.allclose(q, q_f32, atol=5e-2, rtol=5e-2), "mismatch vs f32 reference"

    print("KERNEL_OK")
</pallas_src>

<mosaic_0001>
module attributes {stable_mosaic.version = 11 : i64} {
  func.func @_critic_kernel(%arg0: i32, %arg1: memref<16x12xbf16, #tpu.memory_space<vmem>>, %arg2: memref<16x4xbf16, #tpu.memory_space<vmem>>, %arg3: memref<12x32xbf16, #tpu.memory_space<vmem>>, %arg4: memref<4x32xbf16, #tpu.memory_space<vmem>>, %arg5: memref<1x32xf32, #tpu.memory_space<vmem>>, %arg6: memref<32x32xbf16, #tpu.memory_space<vmem>>, %arg7: memref<1x32xf32, #tpu.memory_space<vmem>>, %arg8: memref<1x32xf32, #tpu.memory_space<vmem>>, %arg9: memref<1x1xf32, #tpu.memory_space<vmem>>, %arg10: memref<16x1xf32, #tpu.memory_space<vmem>>) attributes {dimension_semantics = [#tpu.dimension_semantics<parallel>], iteration_bounds = array<i64: 1>, scalar_prefetch = 0 : i64, scratch_operands = 0 : i64, tpu.core_type = #tpu.core_type<tc>, window_params = [{transform_indices = @transform_0, window_bounds = array<i64: 16, 12>}, {transform_indices = @transform_1, window_bounds = array<i64: 16, 4>}, {pipeline_mode = #tpu.pipeline_mode<synchronous>, transform_indices = @transform_2, window_bounds = array<i64: 12, 32>}, {pipeline_mode = #tpu.pipeline_mode<synchronous>, transform_indices = @transform_3, window_bounds = array<i64: 4, 32>}, {pipeline_mode = #tpu.pipeline_mode<synchronous>, transform_indices = @transform_4, window_bounds = array<i64: 1, 32>}, {pipeline_mode = #tpu.pipeline_mode<synchronous>, transform_indices = @transform_5, window_bounds = array<i64: 32, 32>}, {pipeline_mode = #tpu.pipeline_mode<synchronous>, transform_indices = @transform_6, window_bounds = array<i64: 1, 32>}, {pipeline_mode = #tpu.pipeline_mode<synchronous>, transform_indices = @transform_7, window_bounds = array<i64: 1, 32>}, {pipeline_mode = #tpu.pipeline_mode<synchronous>, transform_indices = @transform_8, window_bounds = array<i64: 1, 1>}, {transform_indices = @transform_9, window_bounds = array<i64: 16, 1>}]} {
    %c0 = arith.constant 0 : index
    %c0_0 = arith.constant 0 : index
    %0 = vector.load %arg1[%c0, %c0_0] : memref<16x12xbf16, #tpu.memory_space<vmem>>, vector<16x12xbf16>
    %c0_1 = arith.constant 0 : index
    %c0_2 = arith.constant 0 : index
    %1 = vector.load %arg2[%c0_1, %c0_2] : memref<16x4xbf16, #tpu.memory_space<vmem>>, vector<16x4xbf16>
    %c0_3 = arith.constant 0 : index
    %c0_4 = arith.constant 0 : index
    %2 = vector.load %arg3[%c0_3, %c0_4] : memref<12x32xbf16, #tpu.memory_space<vmem>>, vector<12x32xbf16>
    %cst = arith.constant dense<0.000000e+00> : vector<16x32xf32>
    %3 = tpu.matmul %0, %2, %cst {dimension_numbers = #tpu.dot_dimension_numbers<[1], [0], [0], [1], [0, 0, 1, 1], [], []>} : vector<16x12xbf16>, vector<12x32xbf16>, vector<16x32xf32> -> vector<16x32xf32>
    %c0_5 = arith.constant 0 : index
    %c0_6 = arith.constant 0 : index
    %4 = vector.load %arg4[%c0_5, %c0_6] : memref<4x32xbf16, #tpu.memory_space<vmem>>, vector<4x32xbf16>
    %cst_7 = arith.constant dense<0.000000e+00> : vector<16x32xf32>
    %5 = tpu.matmul %1, %4, %cst_7 {dimension_numbers = #tpu.dot_dimension_numbers<[1], [0], [0], [1], [0, 0, 1, 1], [], []>} : vector<16x4xbf16>, vector<4x32xbf16>, vector<16x32xf32> -> vector<16x32xf32>
    %6 = arith.addf %3, %5 : vector<16x32xf32>
    %c0_8 = arith.constant 0 : index
    %c0_9 = arith.constant 0 : index
    %7 = vector.load %arg5[%c0_8, %c0_9] : memref<1x32xf32, #tpu.memory_space<vmem>>, vector<1x32xf32>
    %8 = vector.broadcast %7 : vector<1x32xf32> to vector<16x32xf32>
    %9 = arith.addf %6, %8 : vector<16x32xf32>
    %cst_10 = arith.constant 0.000000e+00 : f32
    %10 = vector.broadcast %cst_10 : f32 to vector<16x32xf32>
    %11 = arith.maximumf %9, %10 : vector<16x32xf32>
    %12 = arith.truncf %11 : vector<16x32xf32> to vector<16x32xbf16>
    %c0_11 = arith.constant 0 : index
    %c0_12 = arith.constant 0 : index
    %13 = vector.load %arg6[%c0_11, %c0_12] : memref<32x32xbf16, #tpu.memory_space<vmem>>, vector<32x32xbf16>
    %cst_13 = arith.constant dense<0.000000e+00> : vector<16x32xf32>
    %14 = tpu.matmul %12, %13, %cst_13 {dimension_numbers = #tpu.dot_dimension_numbers<[1], [0], [0], [1], [0, 0, 1, 1], [], []>} : vector<16x32xbf16>, vector<32x32xbf16>, vector<16x32xf32> -> vector<16x32xf32>
    %c0_14 = arith.constant 0 : index
    %c0_15 = arith.constant 0 : index
    %15 = vector.load %arg7[%c0_14, %c0_15] : memref<1x32xf32, #tpu.memory_space<vmem>>, vector<1x32xf32>
    %16 = vector.broadcast %15 : vector<1x32xf32> to vector<16x32xf32>
    %17 = arith.addf %14, %16 : vector<16x32xf32>
    %cst_16 = arith.constant 0.000000e+00 : f32
    %18 = vector.broadcast %cst_16 : f32 to vector<16x32xf32>
    %19 = arith.maximumf %17, %18 : vector<16x32xf32>
    %c0_17 = arith.constant 0 : index
    %c0_18 = arith.constant 0 : index
    %20 = vector.load %arg8[%c0_17, %c0_18] : memref<1x32xf32, #tpu.memory_space<vmem>>, vector<1x32xf32>
    %21 = vector.broadcast %20 : vector<1x32xf32> to vector<16x32xf32>
    %22 = arith.mulf %19, %21 : vector<16x32xf32>
    %cst_19 = arith.constant dense<0.000000e+00> : vector<16xf32>
    %23 = vector.multi_reduction <add>, %22, %cst_19 [1] : vector<16x32xf32> to vector<16xf32>
    %24 = vector.shape_cast %23 : vector<16xf32> to vector<16x1xf32>
    %c0_20 = arith.constant 0 : index
    %c0_21 = arith.constant 0 : index
    %25 = vector.load %arg9[%c0_20, %c0_21] : memref<1x1xf32, #tpu.memory_space<vmem>>, vector<1x1xf32>
    %26 = vector.broadcast %25 : vector<1x1xf32> to vector<16x1xf32>
    %27 = arith.addf %24, %26 : vector<16x1xf32>
    %c0_22 = arith.constant 0 : index
    %c0_23 = arith.constant 0 : index
    %28 = vector.load %arg10[%c0_22, %c0_23] : memref<16x1xf32, #tpu.memory_space<vmem>>, vector<16x1xf32>
    tpu.vector_store %arg10[%c0_22, %c0_23], %27 {strides = array<i32>} : memref<16x1xf32, #tpu.memory_space<vmem>>, vector<16x1xf32>,
    return
  }
  func.func @transform_0(%arg0: i32) -> (i32, i32) {
    %c0_i32 = arith.constant 0 : i32
    %c0_i32_0 = arith.constant 0 : i32
    return %arg0, %c0_i32 : i32, i32
  }
  func.func @transform_1(%arg0: i32) -> (i32, i32) {
    %c0_i32 = arith.constant 0 : i32
    %c0_i32_0 = arith.constant 0 : i32
    return %arg0, %c0_i32 : i32, i32
  }
  func.func @transform_2(%arg0: i32) -> (i32, i32) {
    %c0_i32 = arith.constant 0 : i32
    %c0_i32_0 = arith.constant 0 : i32
    %c0_i32_1 = arith.constant 0 : i32
    return %c0_i32, %c0_i32_0 : i32, i32
  }
  func.func @transform_3(%arg0: i32) -> (i32, i32) {
    %c0_i32 = arith.constant 0 : i32
    %c0_i32_0 = arith.constant 0 : i32
    %c0_i32_1 = arith.constant 0 : i32
    return %c0_i32, %c0_i32_0 : i32, i32
  }
  func.func @transform_4(%arg0: i32) -> (i32, i32) {
    %c0_i32 = arith.constant 0 : i32
    %c0_i32_0 = arith.constant 0 : i32
    %c0_i32_1 = arith.constant 0 : i32
    return %c0_i32, %c0_i32_0 : i32, i32
  }
  func.func @transform_5(%arg0: i32) -> (i32, i32) {
    %c0_i32 = arith.constant 0 : i32
    %c0_i32_0 = arith.constant 0 : i32
    %c0_i32_1 = arith.constant 0 : i32
    return %c0_i32, %c0_i32_0 : i32, i32
  }
  func.func @transform_6(%arg0: i32) -> (i32, i32) {
    %c0_i32 = arith.constant 0 : i32
    %c0_i32_0 = arith.constant 0 : i32
    %c0_i32_1 = arith.constant 0 : i32
    return %c0_i32, %c0_i32_0 : i32, i32
  }
  func.func @transform_7(%arg0: i32) -> (i32, i32) {
    %c0_i32 = arith.constant 0 : i32
    %c0_i32_0 = arith.constant 0 : i32
    %c0_i32_1 = arith.constant 0 : i32
    return %c0_i32, %c0_i32_0 : i32, i32
  }
  func.func @transform_8(%arg0: i32) -> (i32, i32) {
    %c0_i32 = arith.constant 0 : i32
    %c0_i32_0 = arith.constant 0 : i32
    %c0_i32_1 = arith.constant 0 : i32
    return %c0_i32, %c0_i32_0 : i32, i32
  }
  func.func @transform_9(%arg0: i32) -> (i32, i32) {
    %c0_i32 = arith.constant 0 : i32
    %c0_i32_0 = arith.constant 0 : i32
    return %arg0, %c0_i32 : i32, i32
  }
}

</mosaic_0001>

<llo_original>
// kernel: critic_forward.1
$region0: #{critic_forward.1}
  #allocation0 [shape = 'u32[]', space=smem, size = 0x4, offset = 0x4, fixed_abs, tag = 'smem constant byte address 0x4 - core index']
  #allocation1 [shape = 'u32[144,128]{1,0:T(1,128)}', space=vmem, size = 0x12000, scoped, tag = 'internal scratch']
  #allocation2 [shape = 'f32[1,1]{1,0:T(1,128)S(1)}', space=vmem, size = 0x200, scoped, tag = 'scoped memory for critic_forward.1']
  %s0 = inlined_call_operand.vmem [shape: bf16[16,12], index: 0, kind: input, shape index: {}]
  %s1 = inlined_call_operand.vmem [shape: bf16[16,4], index: 1, kind: input, shape index: {}]
  %s2 = inlined_call_operand.vmem [shape: bf16[12,32], index: 2, kind: input, shape index: {}]
  %s3 = inlined_call_operand.vmem [shape: bf16[4,32], index: 3, kind: input, shape index: {}]
  %s4 = inlined_call_operand.vmem [shape: f32[1,32], index: 4, kind: input, shape index: {}]
  %s5 = inlined_call_operand.vmem [shape: bf16[32,32], index: 5, kind: input, shape index: {}]
  %s6 = inlined_call_operand.vmem [shape: f32[1,32], index: 6, kind: input, shape index: {}]
  %s7 = inlined_call_operand.vmem [shape: f32[1,32], index: 7, kind: input, shape index: {}]
  %s8 = inlined_call_operand.<no memory space> [shape: f32[1,1], index: 8, kind: input, shape index: {}]
  %s9 = inlined_call_operand.vmem [shape: f32[16,1], index: 9, kind: output, shape index: {}]
  %s10 = sld [smem:[#allocation0]]
  $region46: #{critic_forward.1} parent=0
    _
  %s12 = ssub.s32 1, %s10
  %s13 = scalar_select 0, %s12, %s10
  %v14 = vstv %s8
  %15 = vst [vmem:[#allocation2] sm:$0x1] %v14
  // Predicated region
  $region2: #{critic_forward.1} parent=0 // pred_check
    _
  $region3: #{critic_forward.1} parent=0 // pred_check_branch
    %17 = sbr.rel (0) target = $region5
  $region4: #{critic_forward.1} parent=0 // pred_region
    _
  $region5: #{critic_forward.1} parent=0 // pred_fallthru
    _
  // Predicated region
  $region6: #{critic_forward.1} parent=0 // pred_check
    _
  $region7: #{critic_forward.1} parent=0 // pred_check_branch
    %19 = sbr.rel (0) target = $region9
  $region8: #{critic_forward.1} parent=0 // pred_region
    _
  $region9: #{critic_forward.1} parent=0 // pred_fallthru
    _
  // Predicated region
  $region10: #{critic_forward.1} parent=0 // pred_check
    _
  $region11: #{critic_forward.1} parent=0 // pred_check_branch
    %21 = sbr.rel (0) target = $region13
  $region12: #{critic_forward.1} parent=0 // pred_region
    _
  $region13: #{critic_forward.1} parent=0 // pred_fallthru
    _
  // Predicated region
  $region14: #{critic_forward.1} parent=0 // pred_check
    _
  $region15: #{critic_forward.1} parent=0 // pred_check_branch
    %23 = sbr.rel (0) target = $region17
  $region16: #{critic_forward.1} parent=0 // pred_region
    _
  $region17: #{critic_forward.1} parent=0 // pred_fallthru
    _
  // Predicated region
  $region18: #{critic_forward.1} parent=0 // pred_check
    _
  $region19: #{critic_forward.1} parent=0 // pred_check_branch
    %25 = sbr.rel (0) target = $region21
  $region20: #{critic_forward.1} parent=0 // pred_region
    _
  $region21: #{critic_forward.1} parent=0 // pred_fallthru
    _
  // Predicated region
  $region22: #{critic_forward.1} parent=0 // pred_check
    _
  $region23: #{critic_forward.1} parent=0 // pred_check_branch
    %27 = sbr.rel (0) target = $region25
  $region24: #{critic_forward.1} parent=0 // pred_region
    _
  $region25: #{critic_forward.1} parent=0 // pred_fallthru
    _
  // Predicated region
  $region26: #{critic_forward.1} parent=0 // pred_check
    _
  $region27: #{critic_forward.1} parent=0 // pred_check_branch
    %29 = sbr.rel (0) target = $region29
  $region28: #{critic_forward.1} parent=0 // pred_region
    _
  $region29: #{critic_forward.1} parent=0 // pred_fallthru
    _
  // Predicated region
  $region30: #{critic_forward.1} parent=0 // pred_check
    _
  $region31: #{critic_forward.1} parent=0 // pred_check_branch
    %31 = sbr.rel (0) target = $region33
  $region32: #{critic_forward.1} parent=0 // pred_region
    _
  $region33: #{critic_forward.1} parent=0 // pred_fallthru
    _
  // Predicated region
  $region34: #{critic_forward.1} parent=0 // pred_check
    _
  $region35: #{critic_forward.1} parent=0 // pred_check_branch
    %33 = sbr.rel (0) target = $region37
  $region36: #{critic_forward.1} parent=0 // pred_region
    _
  $region37: #{critic_forward.1} parent=0 // pred_fallthru
    _
  %v35 = vld [vmem:[%s0] sm:$0xf]
  %v36 = vld [vmem:[%s0 + $0x4] sm:$0xf]
  %v37 = vld [vmem:[%s1] sm:$0xf]
  %v38 = vld [vmem:[%s1 + $0x4] sm:$0xf]
  %v39 = vld [vmem:[%s2] sm:$0xf]
  %v40 = vld [vmem:[%s2 + $0x4] sm:$0x3]
  %v41 = vld [vmem:[%s3] sm:$0x3]
  %v44 = vunpack.c.l.b16 %v37
  %v45 = vunpack.c.l.b16 %v38
  %v46 = vpack.c.b16 %v45, %v44
  %vm47 = vcmask 31744
  %v49 = vsel %vm47, %v46, 0
  %vm51 = vcmask 1041408
  %v53 = vsel %vm51, %v41, 0
  %55 = vmatprep.subr.bf16.mxu0 0
  %56 = vmatpush1.bf16.msra.mxu0 %v53
  %57 = vmatprep.subr.bf16.mxu0 0
  %58 = vmatpush1.bf16.msra.mxu0 0
  %59 = vmatprep.subr.bf16.mxu0 0
  %60 = vmatpush1.bf16.msra.mxu0 0
  %61 = vmatprep.subr.bf16.mxu0 0
  %62 = vmatpush1.bf16.msra.mxu0 0
  %63 = vmatprep.subr.bf16.mxu0 0
  %64 = vmatpush1.bf16.msra.mxu0 0
  %65 = vmatprep.subr.bf16.mxu0 0
  %66 = vmatpush1.bf16.msra.mxu0 0
  %67 = vmatprep.subr.bf16.mxu0 0
  %68 = vmatpush1.bf16.msra.mxu0 0
  %69 = vmatprep.subr.bf16.mxu0 0
  %70 = vmatpush1.bf16.msra.mxu0 0
  %71 = vmatprep.subr.bf16.mxu0 0
  %72 = vmatpush1.bf16.msra.mxu0 0
  %73 = vmatprep.subr.bf16.mxu0 0
  %74 = vmatpush1.bf16.msra.mxu0 0
  %75 = vmatprep.subr.bf16.mxu0 0
  %76 = vmatpush1.bf16.msra.mxu0 0
  %77 = vmatprep.subr.bf16.mxu0 0
  %78 = vmatpush1.bf16.msra.mxu0 0
  %79 = vmatprep.subr.bf16.mxu0 0
  %80 = vmatpush1.bf16.msra.mxu0 0
  %81 = vmatprep.subr.bf16.mxu0 0
  %82 = vmatpush1.bf16.msra.mxu0 0
  %83 = vmatprep.subr.bf16.mxu0 0
  %84 = vmatpush1.bf16.msra.mxu0 0
  %85 = vmatprep.subr.bf16.mxu0 0
  %86 = vmatpush1.bf16.msra.mxu0 0
  %87 = vmatprep.mubr.bf16.mxu0 0
  %88 = vmatmul.mubr.bf16.gmra.mrb[0].mxu0 %v49
  %v89 = vpop.f32.mrb[0].mxu0
  %v90 = vadd.f32 0.0, %v89
  %v91 = vpop.f32.mrb[0].mxu0
  %v92 = vpop.f32.mrb[0].mxu0
  %v93 = vadd.f32 0.0, %v92
  %v94 = vpop.f32.mrb[0].mxu0
  %95 = vdwg.mxu0
  %v98 = vunpack.c.l.b16 %v35
  %v99 = vunpack.c.l.b16 %v36
  %v100 = vpack.c.b16 %v99, %v98
  %v103 = vunpack.c.l.b16 %v39
  %v104 = vunpack.c.l.b16 %v40
  %v105 = vpack.c.b16 %v104, %v103
  %vm106 = vcmask 97280
  %v108 = vsel %vm106, %v100, 0
  %vm110 = vcmask 1045504
  %v112 = vsel %vm110, %v105, 0
  %114 = vmatprep.subr.bf16.mxu0 0
  %115 = vmatpush1.bf16.msra.mxu0 %v112
  %116 = vmatprep.subr.bf16.mxu0 0
  %117 = vmatpush1.bf16.msra.mxu0 0
  %118 = vmatprep.subr.bf16.mxu0 0
  %119 = vmatpush1.bf16.msra.mxu0 0
  %120 = vmatprep.subr.bf16.mxu0 0
  %121 = vmatpush1.bf16.msra.mxu0 0
  %122 = vmatprep.subr.bf16.mxu0 0
  %123 = vmatpush1.bf16.msra.mxu0 0
  %124 = vmatprep.subr.bf16.mxu0 0
  %125 = vmatpush1.bf16.msra.mxu0 0
  %126 = vmatprep.subr.bf16.mxu0 0
  %127 = vmatpush1.bf16.msra.mxu0 0
  %128 = vmatprep.subr.bf16.mxu0 0
  %129 = vmatpush1.bf16.msra.mxu0 0
  %130 = vmatprep.subr.bf16.mxu0 0
  %131 = vmatpush1.bf16.msra.mxu0 0
  %132 = vmatprep.subr.bf16.mxu0 0
  %133 = vmatpush1.bf16.msra.mxu0 0
  %134 = vmatprep.subr.bf16.mxu0 0
  %135 = vmatpush1.bf16.msra.mxu0 0
  %136 = vmatprep.subr.bf16.mxu0 0
  %137 = vmatpush1.bf16.msra.mxu0 0
  %138 = vmatprep.subr.bf16.mxu0 0
  %139 = vmatpush1.bf16.msra.mxu0 0
  %140 = vmatprep.subr.bf16.mxu0 0
  %141 = vmatpush1.bf16.msra.mxu0 0
  %142 = vmatprep.subr.bf16.mxu0 0
  %143 = vmatpush1.bf16.msra.mxu0 0
  %144 = vmatprep.subr.bf16.mxu0 0
  %145 = vmatpush1.bf16.msra.mxu0 0
  %146 = vmatprep.mubr.bf16.mxu0 0
  %147 = vmatmul.mubr.bf16.gmra.mrb[0].mxu0 %v108
  %v148 = vpop.f32.mrb[0].mxu0
  %v149 = vadd.f32 %v90, %v148
  %v150 = vpop.f32.mrb[0].mxu0
  %v151 = vpop.f32.mrb[0].mxu0
  %v152 = vadd.f32 %v93, %v151
  %v153 = vpop.f32.mrb[0].mxu0
  %154 = vdwg.mxu0
  %v155 = vld [vmem:[%s4] sm:$0x1]
  %v157 = vlaneseq
  %v158 = vshrl.u32 %v157, 7
  %v159 = vsub.s32 0, %v158
  %v160 = vrot.slane %v155, %v159
  %v162 = vadd.f32 %v149, %v160
  %v163 = vadd.f32 %v152, %v160
  %v164 = vmax.f32 %v162, 0.0
  %v165 = vmax.f32 %v163, 0.0
  %v166 = vpack.c.bf16 %v165, %v164
  %v167 = vld [vmem:[%s5] sm:$0xf]
  %v168 = vld [vmem:[%s5 + $0x4] sm:$0xf]
  %v169 = vld [vmem:[%s5 + $0x8] sm:$0xf]
  %v170 = vld [vmem:[%s5 + $0xc] sm:$0xf]
  %v171 = vld [vmem:[%s6] sm:$0x1]
  %v173 = vlaneseq
  %v174 = vshrl.u32 %v173, 7
  %v175 = vsub.s32 0, %v174
  %v176 = vrot.slane %v171, %v175
  %v182 = vunpack.c.l.b16 %v167
  %v183 = vunpack.c.l.b16 %v168
  %v184 = vunpack.c.l.b16 %v169
  %v185 = vunpack.c.l.b16 %v170
  %v186 = vpack.c.b16 %v183, %v182
  %v187 = vpack.c.b16 %v185, %v184
  %vm190 = vcmask 261120
  %v192 = vsel %vm190, %v166, 0
  %194 = vmatprep.subr.bf16.mxu0 0
  %195 = vmatpush1.bf16.msra.mxu0 %v186
  %196 = vmatprep.subr.bf16.mxu0 0
  %197 = vmatpush1.bf16.msra.mxu0 %v187
  %198 = vmatprep.subr.bf16.mxu0 0
  %199 = vmatpush1.bf16.msra.mxu0 0
  %200 = vmatprep.subr.bf16.mxu0 0
  %201 = vmatpush1.bf16.msra.mxu0 0
  %202 = vmatprep.subr.bf16.mxu0 0
  %203 = vmatpush1.bf16.msra.mxu0 0
  %204 = vmatprep.subr.bf16.mxu0 0
  %205 = vmatpush1.bf16.msra.mxu0 0
  %206 = vmatprep.subr.bf16.mxu0 0
  %207 = vmatpush1.bf16.msra.mxu0 0
  %208 = vmatprep.subr.bf16.mxu0 0
  %209 = vmatpush1.bf16.msra.mxu0 0
  %210 = vmatprep.subr.bf16.mxu0 0
  %211 = vmatpush1.bf16.msra.mxu0 0
  %212 = vmatprep.subr.bf16.mxu0 0
  %213 = vmatpush1.bf16.msra.mxu0 0
  %214 = vmatprep.subr.bf16.mxu0 0
  %215 = vmatpush1.bf16.msra.mxu0 0
  %216 = vmatprep.subr.bf16.mxu0 0
  %217 = vmatpush1.bf16.msra.mxu0 0
  %218 = vmatprep.subr.bf16.mxu0 0
  %219 = vmatpush1.bf16.msra.mxu0 0
  %220 = vmatprep.subr.bf16.mxu0 0
  %221 = vmatpush1.bf16.msra.mxu0 0
  %222 = vmatprep.subr.bf16.mxu0 0
  %223 = vmatpush1.bf16.msra.mxu0 0
  %224 = vmatprep.subr.bf16.mxu0 0
  %225 = vmatpush1.bf16.msra.mxu0 0
  %226 = vmatprep.mubr.bf16.mxu0 0
  %227 = vmatmul.mubr.bf16.gmra.mrb[0].mxu0 %v192
  %v228 = vpop.f32.mrb[0].mxu0
  %v229 = vadd.f32 %v176, %v228
  %v230 = vpop.f32.mrb[0].mxu0
  %v231 = vpop.f32.mrb[0].mxu0
  %v232 = vadd.f32 %v176, %v231
  %v233 = vpop.f32.mrb[0].mxu0
  %234 = vdwg.mxu0
  %v235 = vmax.f32 %v229, 0.0
  %v236 = vmax.f32 %v232, 0.0
  %v237 = vld [vmem:[%s7] sm:$0x1]
  %v239 = vlaneseq
  %v240 = vshrl.u32 %v239, 7
  %v241 = vsub.s32 0, %v240
  %v242 = vrot.slane %v237, %v241
  %v244 = vmul.f32 %v235, %v242
  %v245 = vmul.f32 %v236, %v242
  %v246 = vsel %vm190, %v244, 0.0
  %247 = vadd.xlane.f32.xlu0 %v246
  %v248 = vpop.xlane.xlu0 %247
  %v249 = vsel %vm190, %v245, 0.0
  %250 = vadd.xlane.f32.xlu0 %v249
  %v251 = vpop.xlane.xlu0 %250
  %v252 = vld [vmem:[#allocation2] sm:$0x1]
  %v254 = vlaneseq
  %v255 = vshrl.u32 %v254, 7
  %v256 = vsub.s32 0, %v255
  %v257 = vrot.slane %v252, %v256
  %v259 = vadd.f32 %v248, %v257
  %v260 = vadd.f32 %v251, %v257
  %vm261 = vcmask 7168
  %262 = vst.msk [vmem:[%s9] sm:$0xff] %vm261, %v259
  %263 = vst.msk [vmem:[%s9 + $0x8] sm:$0xff] %vm261, %v260
  // Predicated region
  $region38: #{critic_forward.1} parent=0 // pred_check
    _
  $region39: #{critic_forward.1} parent=0 // pred_check_branch
    %265 = sbr.rel (0) target = $region41
  $region40: #{critic_forward.1} parent=0 // pred_region
    _
  $region41: #{critic_forward.1} parent=0 // pred_fallthru
    _
  // Predicated region
  $region42: #{critic_forward.1} parent=0 // pred_check
    _
  $region43: #{critic_forward.1} parent=0 // pred_check_branch
    %267 = sbr.rel (0) target = $region45
  $region44: #{critic_forward.1} parent=0 // pred_region
    _
  $region45: #{critic_forward.1} parent=0 // pred_fallthru
    _

</llo_original>
